<compile_context>
chip_gen: v6e
topology: v6e:2x2x1
jax: 0.10.0
libtpu: 0.0.40
codegen_flags: <defaults>
</compile_context>

<pallas_src>
import numpy as np
import jax
import jax.numpy as jnp
from jax.experimental import pallas as pl
from jax.experimental.pallas import tpu as pltpu


def _round_up(x, m):
    return (x + m - 1) // m * m


def _default_block_m():
    # v5e: 4x128x128 MXU -> TM=128 already saturates it and halves the
    # (TM, TP) hidden intermediate; v6e/v7x (256x256 MXU) prefer TM=256.
    try:
        kind = jax.devices()[0].device_kind.lower()
    except Exception:
        return 256
    if "v5e" in kind or "v5 lite" in kind or "v5lite" in kind:
        return 128
    return 256


def _choose_tp(H, P, *, max_tp=2048, slab_bytes=4 * 1024 * 1024):
    """Pick the pf-dim tile so each (H, TP) bf16 weight slab is ~<= slab_bytes."""
    cap = max(128, min(max_tp, (slab_bytes // max(1, 2 * H)) // 128 * 128))
    if P <= cap:
        return P, P                      # single slab, full (possibly non-128) dim
    return cap, _round_up(P, cap)        # tiled: TP multiple of 128


def prepare_ffn_params(w1, b1, w2, b2, *, max_tp=2048):
    """One-time weight prep: pad pf dim (if tiled) and cast weights to bf16.

    w1: (H, P) == PyTorch fc_1.weight.T      b1: (P,)
    w2: (P, H) == PyTorch fc_2.weight.T      b2: (H,)
    """
    w1 = jnp.asarray(w1); b1 = jnp.asarray(b1)
    w2 = jnp.asarray(w2); b2 = jnp.asarray(b2)
    H, P = w1.shape
    assert w2.shape == (P, H) and b1.shape == (P,) and b2.shape == (H,)
    TP, Pp = _choose_tp(H, P, max_tp=max_tp)
    if Pp != P:
        # zero-padded pf columns/rows contribute exactly 0 through relu + fc_2
        w1 = jnp.pad(w1, ((0, 0), (0, Pp - P)))
        b1 = jnp.pad(b1, (0, Pp - P))
        w2 = jnp.pad(w2, ((0, Pp - P), (0, 0)))
    return {
        "w1": w1.astype(jnp.bfloat16),
        "b1": b1.astype(jnp.float32).reshape(1, Pp),
        "w2": w2.astype(jnp.bfloat16),
        "b2": b2.astype(jnp.float32).reshape(1, H),
        "H": H, "P": P, "Pp": Pp, "TP": TP,
    }


def ffn_kernel(x_ref, w1_ref, b1_ref, w2_ref, b2_ref, o_ref):
    # x_ref : (TM, H)  bf16      w1_ref: (H, TP) bf16    b1_ref: (1, TP) f32
    # w2_ref: (TP, H)  bf16      b2_ref: (1, H)  f32     o_ref : (TM, H) f32
    p = pl.program_id(1)

    @pl.when(p == 0)
    def _init():
        # start the resident f32 output accumulator at the fc_2 bias
        o_ref[...] = jnp.broadcast_to(b2_ref[...], o_ref.shape)

    # fc_1 (this pf slab): bf16 MXU matmul, f32 accumulate, f32 bias + ReLU
    h = jnp.dot(x_ref[...], w1_ref[...], preferred_element_type=jnp.float32)
    h = jnp.maximum(h + b1_ref[...], 0.0)
    # dropout: identity in eval / inference mode
    # TODO(synk): training-mode dropout would need pltpu.prng_seed / prng_random_bits masking.
    # fc_2 partial product accumulated into the resident output block
    o_ref[...] += jnp.dot(h.astype(jnp.bfloat16), w2_ref[...],
                          preferred_element_type=jnp.float32)


def _make_spec(shape, index_map, pipeline_mode=None):
    if pipeline_mode is None:
        return pl.BlockSpec(shape, index_map)
    return pl.BlockSpec(shape, index_map, pipeline_mode=pipeline_mode)


def _ffn_call(x2, params, *, TM, Mp, single_buffer_weights):
    H, TP, Pp = params["H"], params["TP"], params["Pp"]
    n_m, n_p = Mp // TM, Pp // TP
    w_pm = pl.Buffered(1) if single_buffer_weights else None

    # VMEM budget: weight slabs (+biases) x buffer count, double-buffered x /
    # output blocks, and the (TM, TP) hidden intermediate (f32 + bf16 copy).
    wb = 1 if single_buffer_weights else 2
    vmem_needed = (
        wb * (H * TP * 2 + TP * H * 2 + TP * 4 + H * 4)
        + 2 * TM * H * 2          # x blocks (bf16, double buffered)
        + 2 * TM * H * 4          # output blocks (f32, double buffered)
        + TM * TP * (4 + 2)       # hidden intermediate: f32 + bf16 copy
    )
    vmem_limit = int(min(64 * 1024 * 1024,
                         max(16 * 1024 * 1024, 2 * vmem_needed + 2 * 1024 * 1024)))

    cost = pl.CostEstimate(
        flops=4 * Mp * H * Pp,                                   # two (Mp,H,Pp) matmuls
        transcendentals=0,
        bytes_accessed=Mp * H * 2 + 2 * H * Pp * 2 + (Pp + H) * 4 + Mp * H * 4,
    )

    return pl.pallas_call(
        ffn_kernel,
        out_shape=jax.ShapeDtypeStruct((Mp, H), jnp.float32),
        grid=(n_m, n_p),
        in_specs=[
            _make_spec((TM, H), lambda m, p: (m, 0)),           # x row block (streams)
            _make_spec((H, TP), lambda m, p: (0, p), w_pm),     # w1 column slab
            _make_spec((1, TP), lambda m, p: (0, p), w_pm),     # b1 slab
            _make_spec((TP, H), lambda m, p: (p, 0), w_pm),     # w2 row slab
            _make_spec((1, H),  lambda m, p: (0, 0), w_pm),     # b2
        ],
        out_specs=pl.BlockSpec((TM, H), lambda m, p: (m, 0)),
        compiler_params=pltpu.CompilerParams(
            dimension_semantics=("parallel", "arbitrary"),
            vmem_limit_bytes=vmem_limit),
        cost_estimate=cost,
    )(x2, params["w1"], params["b1"], params["w2"], params["b2"])


def positionwise_ffn(x, params, *, block_m=None):
    """y = relu(x @ w1 + b1) @ w2 + b2, fused in one Pallas kernel (eval mode)."""
    H, TP, Pp = params["H"], params["TP"], params["Pp"]
    orig_shape = x.shape
    assert orig_shape[-1] == H
    M = int(np.prod(orig_shape[:-1]))

    if block_m is None:
        block_m = _default_block_m()
    TM = min(block_m, _round_up(M, 8))
    Mp = _round_up(M, TM)

    # bf16 activations (halves DMA / VMEM); pad rows only when needed.
    x2 = x.reshape(M, H).astype(jnp.bfloat16)
    if Mp != M:
        x2 = jnp.pad(x2, ((0, Mp - M), (0, 0)))

    if Pp // TP == 1:
        # resident weights: try single-buffered (pl.Buffered(1)), fall back if
        # this jax/libtpu build rejects pipeline_mode.
        try:
            out = _ffn_call(x2, params, TM=TM, Mp=Mp, single_buffer_weights=True)
        except Exception:
            out = _ffn_call(x2, params, TM=TM, Mp=Mp, single_buffer_weights=False)
    else:
        out = _ffn_call(x2, params, TM=TM, Mp=Mp, single_buffer_weights=False)

    return out[:M].reshape(orig_shape)


def positionwise_ffn_ref(x, w1, b1, w2, b2):
    """Pure-JAX f32 reference mirroring the PyTorch forward (eval mode)."""
    h = jnp.maximum(x @ w1 + b1, 0.0)
    return h @ w2 + b2


if __name__ == "__main__":
    key = jax.random.PRNGKey(0)
    s = 0.05

    # --- case 1: module-scale shapes, single weight slab (resident weights) ---
    B, S, hid_dim, pf_dim = 2, 8, 32, 64
    kx, k1, k2, k3, k4, key = jax.random.split(key, 6)
    x = jax.random.normal(kx, (B, S, hid_dim), jnp.float32)
    w1 = s * jax.random.normal(k1, (hid_dim, pf_dim), jnp.float32)   # fc_1.weight.T
    b1 = s * jax.random.normal(k2, (pf_dim,), jnp.float32)
    w2 = s * jax.random.normal(k3, (pf_dim, hid_dim), jnp.float32)   # fc_2.weight.T
    b2 = s * jax.random.normal(k4, (hid_dim,), jnp.float32)

    params = prepare_ffn_params(w1, b1, w2, b2)          # one-time pad + bf16 cast
    out = jax.block_until_ready(positionwise_ffn(x, params))
    ref = positionwise_ffn_ref(x, w1, b1, w2, b2)
    np.testing.assert_allclose(np.asarray(out), np.asarray(ref), rtol=2e-2, atol=2e-2)

    # --- case 2: exercise the pf-tiled ("arbitrary" axis) + ragged-M path ---
    B2, S2, hid2, pf2 = 2, 9, 32, 256
    kx, k1, k2, k3, k4, key = jax.random.split(key, 6)
    x_b = jax.random.normal(kx, (B2, S2, hid2), jnp.float32)
    w1_b = s * jax.random.normal(k1, (hid2, pf2), jnp.float32)
    b1_b = s * jax.random.normal(k2, (pf2,), jnp.float32)
    w2_b = s * jax.random.normal(k3, (pf2, hid2), jnp.float32)
    b2_b = s * jax.random.normal(k4, (hid2,), jnp.float32)

    params_b = prepare_ffn_params(w1_b, b1_b, w2_b, b2_b, max_tp=128)  # force 2 pf slabs
    out_b = jax.block_until_ready(positionwise_ffn(x_b, params_b))
    ref_b = positionwise_ffn_ref(x_b, w1_b, b1_b, w2_b, b2_b)
    np.testing.assert_allclose(np.asarray(out_b), np.asarray(ref_b), rtol=2e-2, atol=2e-2)

    print("KERNEL_OK")
</pallas_src>

<mosaic_0001>
module attributes {stable_mosaic.version = 11 : i64} {
  func.func @ffn_kernel(%arg0: i32, %arg1: i32, %arg2: memref<16x32xbf16, #tpu.memory_space<vmem>>, %arg3: memref<32x64xbf16, #tpu.memory_space<vmem>>, %arg4: memref<1x64xf32, #tpu.memory_space<vmem>>, %arg5: memref<64x32xbf16, #tpu.memory_space<vmem>>, %arg6: memref<1x32xf32, #tpu.memory_space<vmem>>, %arg7: memref<16x32xf32, #tpu.memory_space<vmem>>) attributes {dimension_semantics = [#tpu.dimension_semantics<parallel>, #tpu.dimension_semantics<arbitrary>], iteration_bounds = array<i64: 1, 1>, scalar_prefetch = 0 : i64, scratch_operands = 0 : i64, tpu.core_type = #tpu.core_type<tc>, window_params = [{transform_indices = @transform_0, window_bounds = array<i64: 16, 32>}, {pipeline_mode = #tpu.pipeline_mode<synchronous>, transform_indices = @transform_1, window_bounds = array<i64: 32, 64>}, {pipeline_mode = #tpu.pipeline_mode<synchronous>, transform_indices = @transform_2, window_bounds = array<i64: 1, 64>}, {pipeline_mode = #tpu.pipeline_mode<synchronous>, transform_indices = @transform_3, window_bounds = array<i64: 64, 32>}, {pipeline_mode = #tpu.pipeline_mode<synchronous>, transform_indices = @transform_4, window_bounds = array<i64: 1, 32>}, {transform_indices = @transform_5, window_bounds = array<i64: 16, 32>}]} {
    %c0_i32 = arith.constant 0 : i32
    %0 = arith.cmpi eq, %arg1, %c0_i32 : i32
    %1 = arith.extui %0 : i1 to i32
    %c0_i32_0 = arith.constant 0 : i32
    %2 = arith.cmpi ne, %1, %c0_i32_0 : i32
    scf.if %2 {
      %c0_14 = arith.constant 0 : index
      %c0_15 = arith.constant 0 : index
      %17 = vector.load %arg6[%c0_14, %c0_15] : memref<1x32xf32, #tpu.memory_space<vmem>>, vector<1x32xf32>
      %18 = vector.shape_cast %17 : vector<1x32xf32> to vector<1x32xf32>
      %19 = vector.broadcast %18 : vector<1x32xf32> to vector<16x32xf32>
      %c0_16 = arith.constant 0 : index
      %c0_17 = arith.constant 0 : index
      %20 = vector.load %arg7[%c0_16, %c0_17] : memref<16x32xf32, #tpu.memory_space<vmem>>, vector<16x32xf32>
      tpu.vector_store %arg7[%c0_16, %c0_17], %19 {strides = array<i32>} : memref<16x32xf32, #tpu.memory_space<vmem>>, vector<16x32xf32>,
    } else {
    }
    %c0 = arith.constant 0 : index
    %c0_1 = arith.constant 0 : index
    %3 = vector.load %arg2[%c0, %c0_1] : memref<16x32xbf16, #tpu.memory_space<vmem>>, vector<16x32xbf16>
    %c0_2 = arith.constant 0 : index
    %c0_3 = arith.constant 0 : index
    %4 = vector.load %arg3[%c0_2, %c0_3] : memref<32x64xbf16, #tpu.memory_space<vmem>>, vector<32x64xbf16>
    %cst = arith.constant dense<0.000000e+00> : vector<16x64xf32>
    %5 = tpu.matmul %3, %4, %cst {dimension_numbers = #tpu.dot_dimension_numbers<[1], [0], [0], [1], [0, 0, 1, 1], [], []>} : vector<16x32xbf16>, vector<32x64xbf16>, vector<16x64xf32> -> vector<16x64xf32>
    %c0_4 = arith.constant 0 : index
    %c0_5 = arith.constant 0 : index
    %6 = vector.load %arg4[%c0_4, %c0_5] : memref<1x64xf32, #tpu.memory_space<vmem>>, vector<1x64xf32>
    %7 = vector.broadcast %6 : vector<1x64xf32> to vector<16x64xf32>
    %8 = arith.addf %5, %7 : vector<16x64xf32>
    %cst_6 = arith.constant 0.000000e+00 : f32
    %9 = vector.broadcast %cst_6 : f32 to vector<16x64xf32>
    %10 = arith.maximumf %8, %9 : vector<16x64xf32>
    %c0_7 = arith.constant 0 : index
    %c0_8 = arith.constant 0 : index
    %11 = vector.load %arg7[%c0_7, %c0_8] : memref<16x32xf32, #tpu.memory_space<vmem>>, vector<16x32xf32>
    %12 = arith.truncf %10 : vector<16x64xf32> to vector<16x64xbf16>
    %c0_9 = arith.constant 0 : index
    %c0_10 = arith.constant 0 : index
    %13 = vector.load %arg5[%c0_9, %c0_10] : memref<64x32xbf16, #tpu.memory_space<vmem>>, vector<64x32xbf16>
    %cst_11 = arith.constant dense<0.000000e+00> : vector<16x32xf32>
    %14 = tpu.matmul %12, %13, %cst_11 {dimension_numbers = #tpu.dot_dimension_numbers<[1], [0], [0], [1], [0, 0, 1, 1], [], []>} : vector<16x64xbf16>, vector<64x32xbf16>, vector<16x32xf32> -> vector<16x32xf32>
    %15 = arith.addf %11, %14 : vector<16x32xf32>
    %c0_12 = arith.constant 0 : index
    %c0_13 = arith.constant 0 : index
    %16 = vector.load %arg7[%c0_12, %c0_13] : memref<16x32xf32, #tpu.memory_space<vmem>>, vector<16x32xf32>
    tpu.vector_store %arg7[%c0_12, %c0_13], %15 {strides = array<i32>} : memref<16x32xf32, #tpu.memory_space<vmem>>, vector<16x32xf32>,
    return
  }
  func.func @transform_0(%arg0: i32, %arg1: i32) -> (i32, i32) {
    %c0_i32 = arith.constant 0 : i32
    %c0_i32_0 = arith.constant 0 : i32
    return %arg0, %c0_i32 : i32, i32
  }
  func.func @transform_1(%arg0: i32, %arg1: i32) -> (i32, i32) {
    %c0_i32 = arith.constant 0 : i32
    %c0_i32_0 = arith.constant 0 : i32
    return %c0_i32, %arg1 : i32, i32
  }
  func.func @transform_2(%arg0: i32, %arg1: i32) -> (i32, i32) {
    %c0_i32 = arith.constant 0 : i32
    %c0_i32_0 = arith.constant 0 : i32
    return %c0_i32, %arg1 : i32, i32
  }
  func.func @transform_3(%arg0: i32, %arg1: i32) -> (i32, i32) {
    %c0_i32 = arith.constant 0 : i32
    %c0_i32_0 = arith.constant 0 : i32
    return %arg1, %c0_i32 : i32, i32
  }
  func.func @transform_4(%arg0: i32, %arg1: i32) -> (i32, i32) {
    %c0_i32 = arith.constant 0 : i32
    %c0_i32_0 = arith.constant 0 : i32
    %c0_i32_1 = arith.constant 0 : i32
    return %c0_i32, %c0_i32_0 : i32, i32
  }
  func.func @transform_5(%arg0: i32, %arg1: i32) -> (i32, i32) {
    %c0_i32 = arith.constant 0 : i32
    %c0_i32_0 = arith.constant 0 : i32
    return %arg0, %c0_i32 : i32, i32
  }
}

module attributes {stable_mosaic.version = 11 : i64} {
  func.func @ffn_kernel(%arg0: i32, %arg1: i32, %arg2: memref<16x32xbf16, #tpu.memory_space<vmem>>, %arg3: memref<32x64xbf16, #tpu.memory_space<vmem>>, %arg4: memref<1x64xf32, #tpu.memory_space<vmem>>, %arg5: memref<64x32xbf16, #tpu.memory_space<vmem>>, %arg6: memref<1x32xf32, #tpu.memory_space<vmem>>, %arg7: memref<16x32xf32, #tpu.memory_space<vmem>>) attributes {dimension_semantics = [#tpu.dimension_semantics<parallel>, #tpu.dimension_semantics<arbitrary>], iteration_bounds = array<i64: 1, 1>, scalar_prefetch = 0 : i64, scratch_operands = 0 : i64, tpu.core_type = #tpu.core_type<tc>, window_params = [{transform_indices = @transform_0, window_bounds = array<i64: 16, 32>}, {transform_indices = @transform_1, window_bounds = array<i64: 32, 64>}, {transform_indices = @transform_2, window_bounds = array<i64: 1, 64>}, {transform_indices = @transform_3, window_bounds = array<i64: 64, 32>}, {pipeline_mode = #tpu.pipeline_mode<synchronous>, transform_indices = @transform_4, window_bounds = array<i64: 1, 32>}, {transform_indices = @transform_5, window_bounds = array<i64: 16, 32>}]} {
    %c0_i32 = arith.constant 0 : i32
    %0 = arith.cmpi eq, %arg1, %c0_i32 : i32
    %1 = arith.extui %0 : i1 to i32
    %c0_i32_0 = arith.constant 0 : i32
    %2 = arith.cmpi ne, %1, %c0_i32_0 : i32
    scf.if %2 {
      %c0_14 = arith.constant 0 : index
      %c0_15 = arith.constant 0 : index
      %17 = vector.load %arg6[%c0_14, %c0_15] : memref<1x32xf32, #tpu.memory_space<vmem>>, vector<1x32xf32>
      %18 = vector.shape_cast %17 : vector<1x32xf32> to vector<1x32xf32>
      %19 = vector.broadcast %18 : vector<1x32xf32> to vector<16x32xf32>
      %c0_16 = arith.constant 0 : index
      %c0_17 = arith.constant 0 : index
      %20 = vector.load %arg7[%c0_16, %c0_17] : memref<16x32xf32, #tpu.memory_space<vmem>>, vector<16x32xf32>
      tpu.vector_store %arg7[%c0_16, %c0_17], %19 {strides = array<i32>} : memref<16x32xf32, #tpu.memory_space<vmem>>, vector<16x32xf32>,
    } else {
    }
    %c0 = arith.constant 0 : index
    %c0_1 = arith.constant 0 : index
    %3 = vector.load %arg2[%c0, %c0_1] : memref<16x32xbf16, #tpu.memory_space<vmem>>, vector<16x32xbf16>
    %c0_2 = arith.constant 0 : index
    %c0_3 = arith.constant 0 : index
    %4 = vector.load %arg3[%c0_2, %c0_3] : memref<32x64xbf16, #tpu.memory_space<vmem>>, vector<32x64xbf16>
    %cst = arith.constant dense<0.000000e+00> : vector<16x64xf32>
    %5 = tpu.matmul %3, %4, %cst {dimension_numbers = #tpu.dot_dimension_numbers<[1], [0], [0], [1], [0, 0, 1, 1], [], []>} : vector<16x32xbf16>, vector<32x64xbf16>, vector<16x64xf32> -> vector<16x64xf32>
    %c0_4 = arith.constant 0 : index
    %c0_5 = arith.constant 0 : index
    %6 = vector.load %arg4[%c0_4, %c0_5] : memref<1x64xf32, #tpu.memory_space<vmem>>, vector<1x64xf32>
    %7 = vector.broadcast %6 : vector<1x64xf32> to vector<16x64xf32>
    %8 = arith.addf %5, %7 : vector<16x64xf32>
    %cst_6 = arith.constant 0.000000e+00 : f32
    %9 = vector.broadcast %cst_6 : f32 to vector<16x64xf32>
    %10 = arith.maximumf %8, %9 : vector<16x64xf32>
    %c0_7 = arith.constant 0 : index
    %c0_8 = arith.constant 0 : index
    %11 = vector.load %arg7[%c0_7, %c0_8] : memref<16x32xf32, #tpu.memory_space<vmem>>, vector<16x32xf32>
    %12 = arith.truncf %10 : vector<16x64xf32> to vector<16x64xbf16>
    %c0_9 = arith.constant 0 : index
    %c0_10 = arith.constant 0 : index
    %13 = vector.load %arg5[%c0_9, %c0_10] : memref<64x32xbf16, #tpu.memory_space<vmem>>, vector<64x32xbf16>
    %cst_11 = arith.constant dense<0.000000e+00> : vector<16x32xf32>
    %14 = tpu.matmul %12, %13, %cst_11 {dimension_numbers = #tpu.dot_dimension_numbers<[1], [0], [0], [1], [0, 0, 1, 1], [], []>} : vector<16x64xbf16>, vector<64x32xbf16>, vector<16x32xf32> -> vector<16x32xf32>
    %15 = arith.addf %11, %14 : vector<16x32xf32>
    %c0_12 = arith.constant 0 : index
    %c0_13 = arith.constant 0 : index
    %16 = vector.load %arg7[%c0_12, %c0_13] : memref<16x32xf32, #tpu.memory_space<vmem>>, vector<16x32xf32>
    tpu.vector_store %arg7[%c0_12, %c0_13], %15 {strides = array<i32>} : memref<16x32xf32, #tpu.memory_space<vmem>>, vector<16x32xf32>,
    return
  }
  func.func @transform_0(%arg0: i32, %arg1: i32) -> (i32, i32) {
    %c0_i32 = arith.constant 0 : i32
    %c0_i32_0 = arith.constant 0 : i32
    return %arg0, %c0_i32 : i32, i32
  }
  func.func @transform_1(%arg0: i32, %arg1: i32) -> (i32, i32) {
    %c0_i32 = arith.constant 0 : i32
    %c0_i32_0 = arith.constant 0 : i32
    return %c0_i32, %arg1 : i32, i32
  }
  func.func @transform_2(%arg0: i32, %arg1: i32) -> (i32, i32) {
    %c0_i32 = arith.constant 0 : i32
    %c0_i32_0 = arith.constant 0 : i32
    return %c0_i32, %arg1 : i32, i32
  }
  func.func @transform_3(%arg0: i32, %arg1: i32) -> (i32, i32) {
    %c0_i32 = arith.constant 0 : i32
    %c0_i32_0 = arith.constant 0 : i32
    return %arg1, %c0_i32 : i32, i32
  }
  func.func @transform_4(%arg0: i32, %arg1: i32) -> (i32, i32) {
    %c0_i32 = arith.constant 0 : i32
    %c0_i32_0 = arith.constant 0 : i32
    %c0_i32_1 = arith.constant 0 : i32
    return %c0_i32, %c0_i32_0 : i32, i32
  }
  func.func @transform_5(%arg0: i32, %arg1: i32) -> (i32, i32) {
    %c0_i32 = arith.constant 0 : i32
    %c0_i32_0 = arith.constant 0 : i32
    return %arg0, %c0_i32 : i32, i32
  }
}

</mosaic_0001>

<llo_original>
// kernel: tpu_custom_call.1
$region0: #{tpu_custom_call.1}
  #allocation0 [shape = 'u32[]', space=smem, size = 0x4, offset = 0x4, fixed_abs, tag = 'smem constant byte address 0x4 - core index']
  #allocation1 [shape = 'u32[144,128]{1,0:T(1,128)}', space=vmem, size = 0x12000, scoped, tag = 'internal scratch']
  %s0 = inlined_call_operand.vmem [shape: bf16[16,32], index: 0, kind: input, shape index: {}]
  %s1 = inlined_call_operand.vmem [shape: bf16[32,64], index: 1, kind: input, shape index: {}]
  %s2 = inlined_call_operand.vmem [shape: f32[1,64], index: 2, kind: input, shape index: {}]
  %s3 = inlined_call_operand.vmem [shape: bf16[64,32], index: 3, kind: input, shape index: {}]
  %s4 = inlined_call_operand.vmem [shape: f32[1,32], index: 4, kind: input, shape index: {}]
  %s5 = inlined_call_operand.hbm [shape: f32[16,32], index: 5, kind: output, shape index: {}]
  %s6 = sld [smem:[#allocation0]]
  $region34: #{tpu_custom_call.1} parent=0
    _
  %s8 = ssub.s32 1, %s6
  %s9 = scalar_select 0, %s8, %s6
  $region1: #{tpu_custom_call.1} parent=0
    #allocation2 [shape = 'u8[8192]{0}', space=vmem, size = 0x2000, scoped, tag = 'output window, operand 0, single buffered']
    #allocation3 [shape = 's32[1]{0}', space=sflag, size = 0x4, scoped, tag = 'scoped memory for tpu_custom_call.1']
    %10 = vsyncpa [#allocation3], 0
    // Predicated region
    $region2: #{tpu_custom_call.1} parent=1 // pred_check
      _
    $region3: #{tpu_custom_call.1} parent=1 // pred_check_branch
      %12 = sbr.rel (0) target = $region5
    $region4: #{tpu_custom_call.1} parent=1 // pred_region
      _
    $region5: #{tpu_custom_call.1} parent=1 // pred_fallthru
      _
    // Predicated region
    $region6: #{tpu_custom_call.1} parent=1 // pred_check
      _
    $region7: #{tpu_custom_call.1} parent=1 // pred_check_branch
      %14 = sbr.rel (0) target = $region9
    $region8: #{tpu_custom_call.1} parent=1 // pred_region
      _
    $region9: #{tpu_custom_call.1} parent=1 // pred_fallthru
      _
    // Predicated region
    $region10: #{tpu_custom_call.1} parent=1 // pred_check
      _
    $region11: #{tpu_custom_call.1} parent=1 // pred_check_branch
      %16 = sbr.rel (0) target = $region13
    $region12: #{tpu_custom_call.1} parent=1 // pred_region
      _
    $region13: #{tpu_custom_call.1} parent=1 // pred_fallthru
      _
    // Predicated region
    $region14: #{tpu_custom_call.1} parent=1 // pred_check
      _
    $region15: #{tpu_custom_call.1} parent=1 // pred_check_branch
      %18 = sbr.rel (0) target = $region17
    $region16: #{tpu_custom_call.1} parent=1 // pred_region
      _
    $region17: #{tpu_custom_call.1} parent=1 // pred_fallthru
      _
    // Predicated region
    $region18: #{tpu_custom_call.1} parent=1 // pred_check
      _
    $region19: #{tpu_custom_call.1} parent=1 // pred_check_branch
      %20 = sbr.rel (0) target = $region21
    $region20: #{tpu_custom_call.1} parent=1 // pred_region
      _
    $region21: #{tpu_custom_call.1} parent=1 // pred_fallthru
      _
    %p22 = scmp.eq.s32.totalorder 0, 0
    // Predicated region
    $region22: #{tpu_custom_call.1} parent=1 // pred_check
      %p23 = pneg %p22
    $region23: #{tpu_custom_call.1} parent=1 // pred_check_branch
      %25 = sbr.rel (%p23) target = $region25
    $region24: #{tpu_custom_call.1} parent=1 // pred_region
      %v26 = vld [vmem:[%s4] sm:$0x1]
      %v28 = vlaneseq
      %v29 = vshrl.u32 %v28, 7
      %v30 = vsub.s32 0, %v29
      %v31 = vrot.slane %v26, %v30
      %vm33 = vcmask 261120
      %34 = vst.msk [vmem:[#allocation2] sm:$0xff] %vm33, %v31
      %35 = vst.msk [vmem:[#allocation2 + $0x8] sm:$0xff] %vm33, %v31
    $region25: #{tpu_custom_call.1} parent=1 // pred_fallthru
      _
    %v36 = vld [vmem:[%s0] sm:$0xf]
    %v37 = vld [vmem:[%s0 + $0x4] sm:$0xf]
    %v38 = vld [vmem:[%s1] sm:$0xf]
    %v39 = vld [vmem:[%s1 + $0x4] sm:$0xf]
    %v40 = vld [vmem:[%s1 + $0x8] sm:$0xf]
    %v41 = vld [vmem:[%s1 + $0xc] sm:$0xf]
    %v42 = vld [vmem:[%s2] sm:$0x1]
    %v44 = vlaneseq
    %v45 = vshrl.u32 %v44, 7
    %v46 = vsub.s32 0, %v45
    %v47 = vrot.slane %v42, %v46
    %v51 = vunpack.c.l.b16 %v36
    %v52 = vunpack.c.l.b16 %v37
    %v53 = vpack.c.b16 %v52, %v51
    %v58 = vunpack.c.l.b16 %v38
    %v59 = vunpack.c.l.b16 %v39
    %v60 = vunpack.c.l.b16 %v40
    %v61 = vunpack.c.l.b16 %v41
    %v62 = vpack.c.b16 %v59, %v58
    %v63 = vpack.c.b16 %v61, %v60
    %vm66 = vcmask 261120
    %v68 = vsel %vm66, %v53, 0
    %70 = vmatprep.subr.bf16.mxu0 0
    %71 = vmatpush1.bf16.msra.mxu0 0
    %72 = vmatprep.subr.bf16.mxu0 0
    %73 = vmatpush1.bf16.msra.mxu0 0
    %74 = vmatprep.subr.bf16.mxu0 0
    %75 = vmatpush1.bf16.msra.mxu0 0
    %76 = vmatprep.subr.bf16.mxu0 0
    %77 = vmatpush1.bf16.msra.mxu0 0
    %78 = vmatprep.subr.bf16.mxu0 0
    %79 = vmatpush1.bf16.msra.mxu0 0
    %80 = vmatprep.subr.bf16.mxu0 0
    %81 = vmatpush1.bf16.msra.mxu0 0
    %82 = vmatprep.subr.bf16.mxu0 0
    %83 = vmatpush1.bf16.msra.mxu0 %v63
    %84 = vmatprep.subr.bf16.mxu0 0
    %85 = vmatpush1.bf16.msra.mxu0 %v62
    %86 = vmatprep.subr.bf16.mxu0 0
    %87 = vmatpush2.bf16.msra.mxu0 0
    %88 = vmatprep.subr.bf16.mxu0 0
    %89 = vmatpush2.bf16.msra.mxu0 0
    %90 = vmatprep.subr.bf16.mxu0 0
    %91 = vmatpush2.bf16.msra.mxu0 0
    %92 = vmatprep.subr.bf16.mxu0 0
    %93 = vmatpush2.bf16.msra.mxu0 0
    %94 = vmatprep.subr.bf16.mxu0 0
    %95 = vmatpush2.bf16.msra.mxu0 0
    %96 = vmatprep.subr.bf16.mxu0 0
    %97 = vmatpush2.bf16.msra.mxu0 0
    %98 = vmatprep.subr.bf16.mxu0 0
    %99 = vmatpush2.bf16.msra.mxu0 0
    %100 = vmatprep.subr.bf16.mxu0 0
    %101 = vmatpush2.bf16.msra.mxu0 0
    %102 = vmatprep.mubr.bf16.mxu0 0
    %103 = vmatmul.mubr.bf16.gmra.mxu0 %v68
    %v104 = vpop.f32.mrf.mxu0
    %v105 = vadd.f32 %v47, %v104
    %v106 = vpop.f32.mrf.mxu0
    %v107 = vpop.f32.mrf.mxu0
    %v108 = vadd.f32 %v47, %v107
    %v109 = vpop.f32.mrf.mxu0
    %110 = vdwg.mxu0
    %v111 = vmax.f32 %v105, 0.0
    %v112 = vmax.f32 %v108, 0.0
    %v113 = vld [vmem:[#allocation2] sm:$0xff]
    %v114 = vld [vmem:[#allocation2 + $0x8] sm:$0xff]
    %v115 = vpack.c.bf16 %v112, %v111
    %v116 = vld [vmem:[%s3] sm:$0xf]
    %v117 = vld [vmem:[%s3 + $0x4] sm:$0xf]
    %v118 = vld [vmem:[%s3 + $0x8] sm:$0xf]
    %v119 = vld [vmem:[%s3 + $0xc] sm:$0xf]
    %v120 = vld [vmem:[%s3 + $0x10] sm:$0xf]
    %v121 = vld [vmem:[%s3 + $0x14] sm:$0xf]
    %v122 = vld [vmem:[%s3 + $0x18] sm:$0xf]
    %v123 = vld [vmem:[%s3 + $0x1c] sm:$0xf]
    %v132 = vunpack.c.l.b16 %v116
    %v133 = vunpack.c.l.b16 %v117
    %v134 = vunpack.c.l.b16 %v118
    %v135 = vunpack.c.l.b16 %v119
    %v136 = vunpack.c.l.b16 %v120
    %v137 = vunpack.c.l.b16 %v121
    %v138 = vunpack.c.l.b16 %v122
    %v139 = vunpack.c.l.b16 %v123
    %v140 = vpack.c.b16 %v133, %v132
    %v141 = vpack.c.b16 %v135, %v134
    %v142 = vpack.c.b16 %v137, %v136
    %v143 = vpack.c.b16 %v139, %v138
    %vm148 = vcmask 523264
    %v150 = vsel %vm148, %v115, 0
    %152 = vmatprep.subr.bf16.mxu0 0
    %153 = vmatpush1.bf16.msra.mxu0 0
    %154 = vmatprep.subr.bf16.mxu0 0
    %155 = vmatpush1.bf16.msra.mxu0 0
    %156 = vmatprep.subr.bf16.mxu0 0
    %157 = vmatpush1.bf16.msra.mxu0 0
    %158 = vmatprep.subr.bf16.mxu0 0
    %159 = vmatpush1.bf16.msra.mxu0 0
    %160 = vmatprep.subr.bf16.mxu0 0
    %161 = vmatpush1.bf16.msra.mxu0 %v143
    %162 = vmatprep.subr.bf16.mxu0 0
    %163 = vmatpush1.bf16.msra.mxu0 %v142
    %164 = vmatprep.subr.bf16.mxu0 0
    %165 = vmatpush1.bf16.msra.mxu0 %v141
    %166 = vmatprep.subr.bf16.mxu0 0
    %167 = vmatpush1.bf16.msra.mxu0 %v140
    %168 = vmatprep.subr.bf16.mxu0 0
    %169 = vmatpush2.bf16.msra.mxu0 0
    %170 = vmatprep.subr.bf16.mxu0 0
    %171 = vmatpush2.bf16.msra.mxu0 0
    %172 = vmatprep.subr.bf16.mxu0 0
    %173 = vmatpush2.bf16.msra.mxu0 0
    %174 = vmatprep.subr.bf16.mxu0 0
    %175 = vmatpush2.bf16.msra.mxu0 0
    %176 = vmatprep.subr.bf16.mxu0 0
    %177 = vmatpush2.bf16.msra.mxu0 0
    %178 = vmatprep.subr.bf16.mxu0 0
    %179 = vmatpush2.bf16.msra.mxu0 0
    %180 = vmatprep.subr.bf16.mxu0 0
    %181 = vmatpush2.bf16.msra.mxu0 0
    %182 = vmatprep.subr.bf16.mxu0 0
    %183 = vmatpush2.bf16.msra.mxu0 0
    %184 = vmatprep.mubr.bf16.mxu0 0
    %185 = vmatmul.mubr.bf16.gmra.mxu0 %v150
    %v186 = vpop.f32.mrf.mxu0
    %v187 = vadd.f32 0.0, %v186
    %v188 = vpop.f32.mrf.mxu0
    %v189 = vpop.f32.mrf.mxu0
    %v190 = vadd.f32 0.0, %v189
    %v191 = vpop.f32.mrf.mxu0
    %192 = vdwg.mxu0
    %v193 = vadd.f32 %v113, %v187
    %v194 = vadd.f32 %v114, %v190
    %195 = vst.msk [vmem:[#allocation2] sm:$0xff] %vm66, %v193
    %196 = vst.msk [vmem:[#allocation2 + $0x8] sm:$0xff] %vm66, %v194
    // Predicated region
    $region26: #{tpu_custom_call.1} parent=1 // pred_check
      _
    $region27: #{tpu_custom_call.1} parent=1 // pred_check_branch
      %198 = sbr.rel (0) target = $region29
    $region28: #{tpu_custom_call.1} parent=1 // pred_region
      %s200 = ssub.s32 256, 256
      %201 = vsyncadd [#allocation3], %s200
      %s202 = sshll.u32 [#allocation2], 4
      %s203 = int_to_ptr.vmem [resolvable:$true] %s202
      %208 = dma.vmem_to_hbm [thread:$0]  %s203, 256, %s5, [#allocation3], 128, 128, 8
    $region29: #{tpu_custom_call.1} parent=1 // pred_fallthru
      _
    // Predicated region
    $region30: #{tpu_custom_call.1} parent=1 // pred_check
      _
    $region31: #{tpu_custom_call.1} parent=1 // pred_check_branch
      %210 = sbr.rel (0) target = $region33
    $region32: #{tpu_custom_call.1} parent=1 // pred_region
      %211 = dma.done [#allocation3], 256
    $region33: #{tpu_custom_call.1} parent=1 // pred_fallthru
      _
    %212 = vsyncpa [#allocation3], 1

// kernel: tpu_custom_call.1
$region0: #{tpu_custom_call.1}
  #allocation0 [shape = 'u32[]', space=smem, size = 0x4, offset = 0x4, fixed_abs, tag = 'smem constant byte address 0x4 - core index']
  #allocation1 [shape = 'u32[144,128]{1,0:T(1,128)}', space=vmem, size = 0x12000, scoped, tag = 'internal scratch']
  %s0 = inlined_call_operand.vmem [shape: bf16[16,32], index: 0, kind: input, shape index: {}]
  %s1 = inlined_call_operand.vmem [shape: bf16[32,64], index: 1, kind: input, shape index: {}]
  %s2 = inlined_call_operand.vmem [shape: f32[1,64], index: 2, kind: input, shape index: {}]
  %s3 = inlined_call_operand.vmem [shape: bf16[64,32], index: 3, kind: input, shape index: {}]
  %s4 = inlined_call_operand.vmem [shape: f32[1,32], index: 4, kind: input, shape index: {}]
  %s5 = inlined_call_operand.hbm [shape: f32[16,32], index: 5, kind: output, shape index: {}]
  %s6 = sld [smem:[#allocation0]]
  $region34: #{tpu_custom_call.1} parent=0
    _
  %s8 = ssub.s32 1, %s6
  %s9 = scalar_select 0, %s8, %s6
  $region1: #{tpu_custom_call.1} parent=0
    #allocation2 [shape = 'u8[8192]{0}', space=vmem, size = 0x2000, scoped, tag = 'output window, operand 0, single buffered']
    #allocation3 [shape = 's32[1]{0}', space=sflag, size = 0x4, scoped, tag = 'scoped memory for tpu_custom_call.1']
    %10 = vsyncpa [#allocation3], 0
    // Predicated region
    $region2: #{tpu_custom_call.1} parent=1 // pred_check
      _
    $region3: #{tpu_custom_call.1} parent=1 // pred_check_branch
      %12 = sbr.rel (0) target = $region5
    $region4: #{tpu_custom_call.1} parent=1 // pred_region
      _
    $region5: #{tpu_custom_call.1} parent=1 // pred_fallthru
      _
    // Predicated region
    $region6: #{tpu_custom_call.1} parent=1 // pred_check
      _
    $region7: #{tpu_custom_call.1} parent=1 // pred_check_branch
      %14 = sbr.rel (0) target = $region9
    $region8: #{tpu_custom_call.1} parent=1 // pred_region
      _
    $region9: #{tpu_custom_call.1} parent=1 // pred_fallthru
      _
    // Predicated region
    $region10: #{tpu_custom_call.1} parent=1 // pred_check
      _
    $region11: #{tpu_custom_call.1} parent=1 // pred_check_branch
      %16 = sbr.rel (0) target = $region13
    $region12: #{tpu_custom_call.1} parent=1 // pred_region
      _
    $region13: #{tpu_custom_call.1} parent=1 // pred_fallthru
      _
    // Predicated region
    $region14: #{tpu_custom_call.1} parent=1 // pred_check
      _
    $region15: #{tpu_custom_call.1} parent=1 // pred_check_branch
      %18 = sbr.rel (0) target = $region17
    $region16: #{tpu_custom_call.1} parent=1 // pred_region
      _
    $region17: #{tpu_custom_call.1} parent=1 // pred_fallthru
      _
    // Predicated region
    $region18: #{tpu_custom_call.1} parent=1 // pred_check
      _
    $region19: #{tpu_custom_call.1} parent=1 // pred_check_branch
      %20 = sbr.rel (0) target = $region21
    $region20: #{tpu_custom_call.1} parent=1 // pred_region
      _
    $region21: #{tpu_custom_call.1} parent=1 // pred_fallthru
      _
    %p22 = scmp.eq.s32.totalorder 0, 0
    // Predicated region
    $region22: #{tpu_custom_call.1} parent=1 // pred_check
      %p23 = pneg %p22
    $region23: #{tpu_custom_call.1} parent=1 // pred_check_branch
      %25 = sbr.rel (%p23) target = $region25
    $region24: #{tpu_custom_call.1} parent=1 // pred_region
      %v26 = vld [vmem:[%s4] sm:$0x1]
      %v28 = vlaneseq
      %v29 = vshrl.u32 %v28, 7
      %v30 = vsub.s32 0, %v29
      %v31 = vrot.slane %v26, %v30
      %vm33 = vcmask 261120
      %34 = vst.msk [vmem:[#allocation2] sm:$0xff] %vm33, %v31
      %35 = vst.msk [vmem:[#allocation2 + $0x8] sm:$0xff] %vm33, %v31
    $region25: #{tpu_custom_call.1} parent=1 // pred_fallthru
      _
    %v36 = vld [vmem:[%s0] sm:$0xf]
    %v37 = vld [vmem:[%s0 + $0x4] sm:$0xf]
    %v38 = vld [vmem:[%s1] sm:$0xf]
    %v39 = vld [vmem:[%s1 + $0x4] sm:$0xf]
    %v40 = vld [vmem:[%s1 + $0x8] sm:$0xf]
    %v41 = vld [vmem:[%s1 + $0xc] sm:$0xf]
    %v42 = vld [vmem:[%s2] sm:$0x1]
    %v44 = vlaneseq
    %v45 = vshrl.u32 %v44, 7
    %v46 = vsub.s32 0, %v45
    %v47 = vrot.slane %v42, %v46
    %v51 = vunpack.c.l.b16 %v36
    %v52 = vunpack.c.l.b16 %v37
    %v53 = vpack.c.b16 %v52, %v51
    %v58 = vunpack.c.l.b16 %v38
    %v59 = vunpack.c.l.b16 %v39
    %v60 = vunpack.c.l.b16 %v40
    %v61 = vunpack.c.l.b16 %v41
    %v62 = vpack.c.b16 %v59, %v58
    %v63 = vpack.c.b16 %v61, %v60
    %vm66 = vcmask 261120
    %v68 = vsel %vm66, %v53, 0
    %70 = vmatprep.subr.bf16.mxu0 0
    %71 = vmatpush1.bf16.msra.mxu0 0
    %72 = vmatprep.subr.bf16.mxu0 0
    %73 = vmatpush1.bf16.msra.mxu0 0
    %74 = vmatprep.subr.bf16.mxu0 0
    %75 = vmatpush1.bf16.msra.mxu0 0
    %76 = vmatprep.subr.bf16.mxu0 0
    %77 = vmatpush1.bf16.msra.mxu0 0
    %78 = vmatprep.subr.bf16.mxu0 0
    %79 = vmatpush1.bf16.msra.mxu0 0
    %80 = vmatprep.subr.bf16.mxu0 0
    %81 = vmatpush1.bf16.msra.mxu0 0
    %82 = vmatprep.subr.bf16.mxu0 0
    %83 = vmatpush1.bf16.msra.mxu0 %v63
    %84 = vmatprep.subr.bf16.mxu0 0
    %85 = vmatpush1.bf16.msra.mxu0 %v62
    %86 = vmatprep.subr.bf16.mxu0 0
    %87 = vmatpush2.bf16.msra.mxu0 0
    %88 = vmatprep.subr.bf16.mxu0 0
    %89 = vmatpush2.bf16.msra.mxu0 0
    %90 = vmatprep.subr.bf16.mxu0 0
    %91 = vmatpush2.bf16.msra.mxu0 0
    %92 = vmatprep.subr.bf16.mxu0 0
    %93 = vmatpush2.bf16.msra.mxu0 0
    %94 = vmatprep.subr.bf16.mxu0 0
    %95 = vmatpush2.bf16.msra.mxu0 0
    %96 = vmatprep.subr.bf16.mxu0 0
    %97 = vmatpush2.bf16.msra.mxu0 0
    %98 = vmatprep.subr.bf16.mxu0 0
    %99 = vmatpush2.bf16.msra.mxu0 0
    %100 = vmatprep.subr.bf16.mxu0 0
    %101 = vmatpush2.bf16.msra.mxu0 0
    %102 = vmatprep.mubr.bf16.mxu0 0
    %103 = vmatmul.mubr.bf16.gmra.mxu0 %v68
    %v104 = vpop.f32.mrf.mxu0
    %v105 = vadd.f32 %v47, %v104
    %v106 = vpop.f32.mrf.mxu0
    %v107 = vpop.f32.mrf.mxu0
    %v108 = vadd.f32 %v47, %v107
    %v109 = vpop.f32.mrf.mxu0
    %110 = vdwg.mxu0
    %v111 = vmax.f32 %v105, 0.0
    %v112 = vmax.f32 %v108, 0.0
    %v113 = vld [vmem:[#allocation2] sm:$0xff]
    %v114 = vld [vmem:[#allocation2 + $0x8] sm:$0xff]
    %v115 = vpack.c.bf16 %v112, %v111
    %v116 = vld [vmem:[%s3] sm:$0xf]
    %v117 = vld [vmem:[%s3 + $0x4] sm:$0xf]
    %v118 = vld [vmem:[%s3 + $0x8] sm:$0xf]
    %v119 = vld [vmem:[%s3 + $0xc] sm:$0xf]
    %v120 = vld [vmem:[%s3 + $0x10] sm:$0xf]
    %v121 = vld [vmem:[%s3 + $0x14] sm:$0xf]
    %v122 = vld [vmem:[%s3 + $0x18] sm:$0xf]
    %v123 = vld [vmem:[%s3 + $0x1c] sm:$0xf]
    %v132 = vunpack.c.l.b16 %v116
    %v133 = vunpack.c.l.b16 %v117
    %v134 = vunpack.c.l.b16 %v118
    %v135 = vunpack.c.l.b16 %v119
    %v136 = vunpack.c.l.b16 %v120
    %v137 = vunpack.c.l.b16 %v121
    %v138 = vunpack.c.l.b16 %v122
    %v139 = vunpack.c.l.b16 %v123
    %v140 = vpack.c.b16 %v133, %v132
    %v141 = vpack.c.b16 %v135, %v134
    %v142 = vpack.c.b16 %v137, %v136
    %v143 = vpack.c.b16 %v139, %v138
    %vm148 = vcmask 523264
    %v150 = vsel %vm148, %v115, 0
    %152 = vmatprep.subr.bf16.mxu0 0
    %153 = vmatpush1.bf16.msra.mxu0 0
    %154 = vmatprep.subr.bf16.mxu0 0
    %155 = vmatpush1.bf16.msra.mxu0 0
    %156 = vmatprep.subr.bf16.mxu0 0
    %157 = vmatpush1.bf16.msra.mxu0 0
    %158 = vmatprep.subr.bf16.mxu0 0
    %159 = vmatpush1.bf16.msra.mxu0 0
    %160 = vmatprep.subr.bf16.mxu0 0
    %161 = vmatpush1.bf16.msra.mxu0 %v143
    %162 = vmatprep.subr.bf16.mxu0 0
    %163 = vmatpush1.bf16.msra.mxu0 %v142
    %164 = vmatprep.subr.bf16.mxu0 0
    %165 = vmatpush1.bf16.msra.mxu0 %v141
    %166 = vmatprep.subr.bf16.mxu0 0
    %167 = vmatpush1.bf16.msra.mxu0 %v140
    %168 = vmatprep.subr.bf16.mxu0 0
    %169 = vmatpush2.bf16.msra.mxu0 0
    %170 = vmatprep.subr.bf16.mxu0 0
    %171 = vmatpush2.bf16.msra.mxu0 0
    %172 = vmatprep.subr.bf16.mxu0 0
    %173 = vmatpush2.bf16.msra.mxu0 0
    %174 = vmatprep.subr.bf16.mxu0 0
    %175 = vmatpush2.bf16.msra.mxu0 0
    %176 = vmatprep.subr.bf16.mxu0 0
    %177 = vmatpush2.bf16.msra.mxu0 0
    %178 = vmatprep.subr.bf16.mxu0 0
    %179 = vmatpush2.bf16.msra.mxu0 0
    %180 = vmatprep.subr.bf16.mxu0 0
    %181 = vmatpush2.bf16.msra.mxu0 0
    %182 = vmatprep.subr.bf16.mxu0 0
    %183 = vmatpush2.bf16.msra.mxu0 0
    %184 = vmatprep.mubr.bf16.mxu0 0
    %185 = vmatmul.mubr.bf16.gmra.mxu0 %v150
    %v186 = vpop.f32.mrf.mxu0
    %v187 = vadd.f32 0.0, %v186
    %v188 = vpop.f32.mrf.mxu0
    %v189 = vpop.f32.mrf.mxu0
    %v190 = vadd.f32 0.0, %v189
    %v191 = vpop.f32.mrf.mxu0
    %192 = vdwg.mxu0
    %v193 = vadd.f32 %v113, %v187
    %v194 = vadd.f32 %v114, %v190
    %195 = vst.msk [vmem:[#allocation2] sm:$0xff] %vm66, %v193
    %196 = vst.msk [vmem:[#allocation2 + $0x8] sm:$0xff] %vm66, %v194
    // Predicated region
    $region26: #{tpu_custom_call.1} parent=1 // pred_check
      _
    $region27: #{tpu_custom_call.1} parent=1 // pred_check_branch
      %198 = sbr.rel (0) target = $region29
    $region28: #{tpu_custom_call.1} parent=1 // pred_region
      %s200 = ssub.s32 256, 256
      %201 = vsyncadd [#allocation3], %s200
      %s202 = sshll.u32 [#allocation2], 4
      %s203 = int_to_ptr.vmem [resolvable:$true] %s202
      %208 = dma.vmem_to_hbm [thread:$0]  %s203, 256, %s5, [#allocation3], 128, 128, 8
    $region29: #{tpu_custom_call.1} parent=1 // pred_fallthru
      _
    // Predicated region
    $region30: #{tpu_custom_call.1} parent=1 // pred_check
      _
    $region31: #{tpu_custom_call.1} parent=1 // pred_check_branch
      %210 = sbr.rel (0) target = $region33
    $region32: #{tpu_custom_call.1} parent=1 // pred_region
      %211 = dma.done [#allocation3], 256
    $region33: #{tpu_custom_call.1} parent=1 // pred_fallthru
      _
    %212 = vsyncpa [#allocation3], 1

</llo_original>
